<compile_context>
chip_gen: v7x
topology: tpu7x:2x2x1
jax: 0.10.0
libtpu: 0.0.40
codegen_flags: <defaults>
</compile_context>

<pallas_src>
import functools

import jax
import jax.numpy as jnp
from jax import lax
from jax.experimental import pallas as pl
from jax.experimental.pallas import tpu as pltpu

LN_EPS = 1e-5  # PyTorch nn.LayerNorm default


# ---------------------------------- kernel ------------------------------------
def addnorm_kernel(x1_ref, x2_ref, w_ref, b_ref, o_ref, *, d_real, d_pad):
    # x1/x2 tiles: (TR, D_pad) in I/O dtype; w/b: (1, D_pad) f32.
    x = x1_ref[...].astype(jnp.float32) + x2_ref[...].astype(jnp.float32)
    inv_d = jnp.float32(1.0 / d_real)
    # Padded lanes of x are zero, so sum(x) already equals the sum over the
    # real D lanes; divide by the real D (not d_pad).
    mu = jnp.sum(x, axis=-1, keepdims=True) * inv_d
    xc = x - mu
    if d_pad != d_real:
        lane = lax.broadcasted_iota(jnp.int32, (1, d_pad), 1)
        xc_m = jnp.where(lane < d_real, xc, 0.0)
    else:
        xc_m = xc
    var = jnp.sum(xc_m * xc_m, axis=-1, keepdims=True) * inv_d  # biased (torch)
    inv = lax.rsqrt(var + jnp.float32(LN_EPS))                   # EUP, no divide
    y = xc * inv * w_ref[...] + b_ref[...]
    o_ref[...] = y.astype(o_ref.dtype)


# --------------------------------- wrapper -------------------------------------
def _round_up(x, m):
    return (x + m - 1) // m * m


def addnorm(x1, x2, ln_w, ln_b, *, block_bytes=2 << 20):
    """LayerNorm(x1 + x2) over the last dim. x1, x2: (..., D); ln_w/ln_b: (D,)."""
    assert x1.shape == x2.shape
    orig_shape = x1.shape
    orig_dtype = x1.dtype
    D = orig_shape[-1]
    n_rows = 1
    for s in orig_shape[:-1]:
        n_rows *= s

    itemsize = jnp.dtype(orig_dtype).itemsize
    row_align = 8 if itemsize >= 4 else (16 if itemsize == 2 else 32)

    # Lane-dense last dim: pad D up to a multiple of 128.
    D_pad = _round_up(D, 128)

    x1f = x1.reshape(n_rows, D)
    x2f = x2.reshape(n_rows, D)

    # VMEM-byte-aware row tile: aim for ~block_bytes per input block.
    rows_budget = max(row_align, block_bytes // (D_pad * itemsize))
    tr = min(rows_budget, _round_up(n_rows, row_align))
    tr = max(row_align, (tr // row_align) * row_align)

    rows_pad = _round_up(n_rows, tr)
    pad_r = rows_pad - n_rows
    pad_d = D_pad - D
    if pad_r or pad_d:
        x1f = jnp.pad(x1f, ((0, pad_r), (0, pad_d)))
        x2f = jnp.pad(x2f, ((0, pad_r), (0, pad_d)))
    w = jnp.pad(ln_w.astype(jnp.float32), (0, pad_d)).reshape(1, D_pad)
    b = jnp.pad(ln_b.astype(jnp.float32), (0, pad_d)).reshape(1, D_pad)

    grid = (rows_pad // tr,)

    # Explicit scoped-VMEM budget: 2 inputs x 2 buffers + 1 output x 2 buffers
    # in the I/O dtype, ~3 full-tile f32 temporaries inside the kernel, params,
    # plus slack.  Stays well under default scoped limits and v7x's 64 MiB.
    blk_io = tr * D_pad * itemsize
    blk_f32 = tr * D_pad * 4
    vmem_limit = 6 * blk_io + 3 * blk_f32 + 2 * D_pad * 4 + (4 << 20)
    vmem_limit = int(min(vmem_limit, 64 << 20))

    kernel = functools.partial(addnorm_kernel, d_real=D, d_pad=D_pad)

    out = pl.pallas_call(
        kernel,
        out_shape=jax.ShapeDtypeStruct((rows_pad, D_pad), orig_dtype),
        grid=grid,
        in_specs=[
            pl.BlockSpec((tr, D_pad), lambda i: (i, 0)),
            pl.BlockSpec((tr, D_pad), lambda i: (i, 0)),
            pl.BlockSpec((1, D_pad), lambda i: (0, 0)),
            pl.BlockSpec((1, D_pad), lambda i: (0, 0)),
        ],
        out_specs=pl.BlockSpec((tr, D_pad), lambda i: (i, 0)),
        compiler_params=pltpu.CompilerParams(
            dimension_semantics=("parallel",),
            vmem_limit_bytes=vmem_limit,
        ),
    )(x1f, x2f, w, b)

    out = out[:n_rows, :D]
    return out.reshape(orig_shape)


# ------------------------------ pure-JAX reference ------------------------------
def addnorm_ref(x1, x2, ln_w, ln_b):
    x = (x1 + x2).astype(jnp.float32)
    mu = jnp.mean(x, axis=-1, keepdims=True)
    var = jnp.mean((x - mu) ** 2, axis=-1, keepdims=True)
    y = (x - mu) / jnp.sqrt(var + LN_EPS) * ln_w.astype(jnp.float32) + ln_b.astype(jnp.float32)
    return y.astype(x1.dtype)


# ----------------------------------- main ---------------------------------------
if __name__ == "__main__":
    B, S, D = 2, 8, 32

    key = jax.random.PRNGKey(0)
    k1, k2 = jax.random.split(key)
    x1 = jax.random.normal(k1, (B, S, D), dtype=jnp.float32)
    x2 = jax.random.normal(k2, (B, S, D), dtype=jnp.float32)
    # nn.LayerNorm(d_model) default learnable params: weight=1, bias=0
    ln_w = jnp.ones((D,), jnp.float32)
    ln_b = jnp.zeros((D,), jnp.float32)

    out = addnorm(x1, x2, ln_w, ln_b)
    out = jax.block_until_ready(out)

    ref = addnorm_ref(x1, x2, ln_w, ln_b)
    assert out.shape == (B, S, D), out.shape
    assert out.dtype == x1.dtype, out.dtype
    assert jnp.allclose(out, ref, rtol=1e-5, atol=1e-5), "mismatch vs JAX reference"
    print("KERNEL_OK")
</pallas_src>

<mosaic_0001>
module attributes {stable_mosaic.version = 11 : i64} {
  func.func @addnorm_kernel(%arg0: i32, %arg1: memref<16x128xf32, #tpu.memory_space<vmem>>, %arg2: memref<16x128xf32, #tpu.memory_space<vmem>>, %arg3: memref<1x128xf32, #tpu.memory_space<vmem>>, %arg4: memref<1x128xf32, #tpu.memory_space<vmem>>, %arg5: memref<16x128xf32, #tpu.memory_space<vmem>>) attributes {dimension_semantics = [#tpu.dimension_semantics<parallel>], iteration_bounds = array<i64: 1>, scalar_prefetch = 0 : i64, scratch_operands = 0 : i64, tpu.core_type = #tpu.core_type<tc>, window_params = [{transform_indices = @transform_0, window_bounds = array<i64: 16, 128>}, {transform_indices = @transform_1, window_bounds = array<i64: 16, 128>}, {pipeline_mode = #tpu.pipeline_mode<synchronous>, transform_indices = @transform_2, window_bounds = array<i64: 1, 128>}, {pipeline_mode = #tpu.pipeline_mode<synchronous>, transform_indices = @transform_3, window_bounds = array<i64: 1, 128>}, {transform_indices = @transform_4, window_bounds = array<i64: 16, 128>}]} {
    %c0 = arith.constant 0 : index
    %c0_0 = arith.constant 0 : index
    %0 = vector.load %arg1[%c0, %c0_0] : memref<16x128xf32, #tpu.memory_space<vmem>>, vector<16x128xf32>
    %c0_1 = arith.constant 0 : index
    %c0_2 = arith.constant 0 : index
    %1 = vector.load %arg2[%c0_1, %c0_2] : memref<16x128xf32, #tpu.memory_space<vmem>>, vector<16x128xf32>
    %2 = arith.addf %0, %1 : vector<16x128xf32>
    %cst = arith.constant dense<0.000000e+00> : vector<16xf32>
    %3 = vector.multi_reduction <add>, %2, %cst [1] : vector<16x128xf32> to vector<16xf32>
    %4 = vector.shape_cast %3 : vector<16xf32> to vector<16x1xf32>
    %cst_3 = arith.constant 3.125000e-02 : f32
    %5 = vector.broadcast %cst_3 : f32 to vector<16x1xf32>
    %6 = arith.mulf %4, %5 : vector<16x1xf32>
    %7 = vector.broadcast %6 : vector<16x1xf32> to vector<16x128xf32>
    %8 = arith.subf %2, %7 : vector<16x128xf32>
    %9 = tpu.iota {dimensions = array<i32: 1>} : vector<1x128xi32>
    %c32_i32 = arith.constant 32 : i32
    %10 = vector.broadcast %c32_i32 : i32 to vector<1x128xi32>
    %11 = arith.cmpi slt, %9, %10 : vector<1x128xi32>
    %cst_4 = arith.constant 0.000000e+00 : f32
    %12 = vector.shape_cast %11 : vector<1x128xi1> to vector<1x128xi1>
    %13 = vector.broadcast %12 : vector<1x128xi1> to vector<16x128xi1>
    %14 = vector.broadcast %cst_4 : f32 to vector<16x128xf32>
    %15 = arith.select %13, %8, %14 : vector<16x128xi1>, vector<16x128xf32>
    %16 = arith.mulf %15, %15 : vector<16x128xf32>
    %cst_5 = arith.constant dense<0.000000e+00> : vector<16xf32>
    %17 = vector.multi_reduction <add>, %16, %cst_5 [1] : vector<16x128xf32> to vector<16xf32>
    %18 = vector.shape_cast %17 : vector<16xf32> to vector<16x1xf32>
    %cst_6 = arith.constant 3.125000e-02 : f32
    %19 = vector.broadcast %cst_6 : f32 to vector<16x1xf32>
    %20 = arith.mulf %18, %19 : vector<16x1xf32>
    %cst_7 = arith.constant 9.99999974E-6 : f32
    %21 = vector.broadcast %cst_7 : f32 to vector<16x1xf32>
    %22 = arith.addf %20, %21 : vector<16x1xf32>
    %23 = math.rsqrt %22 : vector<16x1xf32>
    %24 = vector.broadcast %23 : vector<16x1xf32> to vector<16x128xf32>
    %25 = arith.mulf %8, %24 : vector<16x128xf32>
    %c0_8 = arith.constant 0 : index
    %c0_9 = arith.constant 0 : index
    %26 = vector.load %arg3[%c0_8, %c0_9] : memref<1x128xf32, #tpu.memory_space<vmem>>, vector<1x128xf32>
    %27 = vector.broadcast %26 : vector<1x128xf32> to vector<16x128xf32>
    %28 = arith.mulf %25, %27 : vector<16x128xf32>
    %c0_10 = arith.constant 0 : index
    %c0_11 = arith.constant 0 : index
    %29 = vector.load %arg4[%c0_10, %c0_11] : memref<1x128xf32, #tpu.memory_space<vmem>>, vector<1x128xf32>
    %30 = vector.broadcast %29 : vector<1x128xf32> to vector<16x128xf32>
    %31 = arith.addf %28, %30 : vector<16x128xf32>
    %c0_12 = arith.constant 0 : index
    %c0_13 = arith.constant 0 : index
    %32 = vector.load %arg5[%c0_12, %c0_13] : memref<16x128xf32, #tpu.memory_space<vmem>>, vector<16x128xf32>
    tpu.vector_store %arg5[%c0_12, %c0_13], %31 {strides = array<i32>} : memref<16x128xf32, #tpu.memory_space<vmem>>, vector<16x128xf32>,
    return
  }
  func.func @transform_0(%arg0: i32) -> (i32, i32) {
    %c0_i32 = arith.constant 0 : i32
    %c0_i32_0 = arith.constant 0 : i32
    return %arg0, %c0_i32 : i32, i32
  }
  func.func @transform_1(%arg0: i32) -> (i32, i32) {
    %c0_i32 = arith.constant 0 : i32
    %c0_i32_0 = arith.constant 0 : i32
    return %arg0, %c0_i32 : i32, i32
  }
  func.func @transform_2(%arg0: i32) -> (i32, i32) {
    %c0_i32 = arith.constant 0 : i32
    %c0_i32_0 = arith.constant 0 : i32
    %c0_i32_1 = arith.constant 0 : i32
    return %c0_i32, %c0_i32_0 : i32, i32
  }
  func.func @transform_3(%arg0: i32) -> (i32, i32) {
    %c0_i32 = arith.constant 0 : i32
    %c0_i32_0 = arith.constant 0 : i32
    %c0_i32_1 = arith.constant 0 : i32
    return %c0_i32, %c0_i32_0 : i32, i32
  }
  func.func @transform_4(%arg0: i32) -> (i32, i32) {
    %c0_i32 = arith.constant 0 : i32
    %c0_i32_0 = arith.constant 0 : i32
    return %arg0, %c0_i32 : i32, i32
  }
}

</mosaic_0001>

<llo_original>
// kernel: tpu_custom_call.1
$region0: #{tpu_custom_call.1}
  #allocation0 [shape = 'u32[]', space=smem, size = 0x4, offset = 0x4, fixed_abs, tag = 'smem constant byte address 0x4 - core index']
  #allocation1 [shape = 'u32[144,128]{1,0:T(1,128)}', space=vmem, size = 0x12000, scoped, tag = 'internal scratch']
  %s0 = inlined_call_operand.hbm [shape: f32[16,128], index: 0, kind: input, shape index: {}]
  %s1 = inlined_call_operand.hbm [shape: f32[16,128], index: 1, kind: input, shape index: {}]
  %s2 = inlined_call_operand.vmem [shape: f32[1,128], index: 2, kind: input, shape index: {}]
  %s3 = inlined_call_operand.vmem [shape: f32[1,128], index: 3, kind: input, shape index: {}]
  %s4 = inlined_call_operand.hbm [shape: f32[16,128], index: 4, kind: output, shape index: {}]
  %s5 = sld [smem:[#allocation0]]
  $region34: #{tpu_custom_call.1} parent=0
    _
  %s7 = ssub.s32 1, %s5
  %s8 = scalar_select 0, %s7, %s5
  $region1: #{tpu_custom_call.1} parent=0
    #allocation2 [shape = 'u8[8192]{0}', space=vmem, size = 0x2000, scoped, tag = 'input window, operand 0, single buffered']
    #allocation3 [shape = 's32[1]{0}', space=sflag, size = 0x4, scoped, tag = 'scoped memory for tpu_custom_call.1']
    #allocation4 [shape = 's32[1]{0}', space=sflag, size = 0x4, scoped, tag = 'scoped memory for tpu_custom_call.1']
    #allocation5 [shape = 'u8[8192]{0}', space=vmem, size = 0x2000, scoped, tag = 'input window, operand 1, single buffered']
    #allocation6 [shape = 's32[1]{0}', space=sflag, size = 0x4, scoped, tag = 'scoped memory for tpu_custom_call.1']
    #allocation7 [shape = 'u8[8192]{0}', space=vmem, size = 0x2000, scoped, tag = 'output window, operand 0, single buffered']
    %9 = vsyncpa [#allocation3], 0
    %10 = vsyncpa [#allocation6], 0
    %11 = vsyncpa [#allocation4], 0
    // Predicated region
    $region2: #{tpu_custom_call.1} parent=1 // pred_check
      _
    $region3: #{tpu_custom_call.1} parent=1 // pred_check_branch
      %13 = sbr.rel (0) target = $region5
    $region4: #{tpu_custom_call.1} parent=1 // pred_region
      %s15 = ssub.s32 256, 256
      %16 = vsyncadd [#allocation3], %s15
      %s17 = sshll.u32 [#allocation2], 4
      %s18 = int_to_ptr.vmem [resolvable:$true] %s17
      %23 = dma.hbm_to_vmem [thread:$0]  %s0, 256, %s18, [#allocation3], 128, 128, 8
    $region5: #{tpu_custom_call.1} parent=1 // pred_fallthru
      _
    // Predicated region
    $region6: #{tpu_custom_call.1} parent=1 // pred_check
      _
    $region7: #{tpu_custom_call.1} parent=1 // pred_check_branch
      %25 = sbr.rel (0) target = $region9
    $region8: #{tpu_custom_call.1} parent=1 // pred_region
      %s27 = ssub.s32 256, 256
      %28 = vsyncadd [#allocation6], %s27
      %s29 = sshll.u32 [#allocation5], 4
      %s30 = int_to_ptr.vmem [resolvable:$true] %s29
      %35 = dma.hbm_to_vmem [thread:$0]  %s1, 256, %s30, [#allocation6], 128, 128, 8
    $region9: #{tpu_custom_call.1} parent=1 // pred_fallthru
      _
    // Predicated region
    $region10: #{tpu_custom_call.1} parent=1 // pred_check
      _
    $region11: #{tpu_custom_call.1} parent=1 // pred_check_branch
      %37 = sbr.rel (0) target = $region13
    $region12: #{tpu_custom_call.1} parent=1 // pred_region
      _
    $region13: #{tpu_custom_call.1} parent=1 // pred_fallthru
      _
    // Predicated region
    $region14: #{tpu_custom_call.1} parent=1 // pred_check
      _
    $region15: #{tpu_custom_call.1} parent=1 // pred_check_branch
      %39 = sbr.rel (0) target = $region17
    $region16: #{tpu_custom_call.1} parent=1 // pred_region
      _
    $region17: #{tpu_custom_call.1} parent=1 // pred_fallthru
      _
    // Predicated region
    $region18: #{tpu_custom_call.1} parent=1 // pred_check
      _
    $region19: #{tpu_custom_call.1} parent=1 // pred_check_branch
      %41 = sbr.rel (0) target = $region21
    $region20: #{tpu_custom_call.1} parent=1 // pred_region
      %42 = dma.done [#allocation3], 256
    $region21: #{tpu_custom_call.1} parent=1 // pred_fallthru
      _
    // Predicated region
    $region22: #{tpu_custom_call.1} parent=1 // pred_check
      _
    $region23: #{tpu_custom_call.1} parent=1 // pred_check_branch
      %44 = sbr.rel (0) target = $region25
    $region24: #{tpu_custom_call.1} parent=1 // pred_region
      %45 = dma.done [#allocation6], 256
    $region25: #{tpu_custom_call.1} parent=1 // pred_fallthru
      _
    %v46 = vld [vmem:[#allocation2] sm:$0xff]
    %v47 = vld [vmem:[#allocation2 + $0x8] sm:$0xff]
    %v48 = vld [vmem:[#allocation5] sm:$0xff]
    %v49 = vld [vmem:[#allocation5 + $0x8] sm:$0xff]
    %v50 = vadd.f32 %v46, %v48
    %v51 = vadd.f32 %v47, %v49
    %52 = vadd.xlane.f32.xlu0 %v50
    %v53 = vpop.xlane.xlu0 %52
    %54 = vadd.xlane.f32.xlu0 %v51
    %v55 = vpop.xlane.xlu0 %54
    %v56 = vmul.f32 %v53, 0.03125
    %v57 = vmul.f32 %v55, 0.03125
    %v58 = vsub.f32 %v50, %v56
    %v59 = vsub.f32 %v51, %v57
    %v60 = vlaneseq
    %v61 = vand.u32 %v60, 127
    %vm62 = vcmp.lt.s32.totalorder %v61, 32
    %v63 = vsel %vm62, 1, 0
    %vm64 = vcmp.eq.s32.totalorder %v63, 1
    %v65 = vsel %vm64, %v58, 0.0
    %v66 = vsel %vm64, %v59, 0.0
    %v67 = vmul.f32 %v65, %v65
    %v68 = vmul.f32 %v66, %v66
    %69 = vadd.xlane.f32.xlu0 %v67
    %v70 = vpop.xlane.xlu0 %69
    %71 = vadd.xlane.f32.xlu0 %v68
    %v72 = vpop.xlane.xlu0 %71
    %v73 = vmul.f32 %v70, 0.03125
    %v74 = vmul.f32 %v72, 0.03125
    %v75 = vadd.f32 %v73, 1e-05
    %v76 = vadd.f32 %v74, 1e-05
    %v77 = vrsqrt.pop %v75
    %v78 = vrsqrt.pop %v76
    %v79 = vmul.f32 %v58, %v77
    %v80 = vmul.f32 %v59, %v78
    %v81 = vld [vmem:[%s2] sm:$0x1]
    %v83 = vlaneseq
    %v84 = vshrl.u32 %v83, 7
    %v85 = vsub.s32 0, %v84
    %v86 = vrot.slane %v81, %v85
    %v88 = vmul.f32 %v79, %v86
    %v89 = vmul.f32 %v80, %v86
    %v90 = vld [vmem:[%s3] sm:$0x1]
    %v92 = vlaneseq
    %v93 = vshrl.u32 %v92, 7
    %v94 = vsub.s32 0, %v93
    %v95 = vrot.slane %v90, %v94
    %v97 = vadd.f32 %v88, %v95
    %v98 = vadd.f32 %v89, %v95
    %99 = vst [vmem:[#allocation7] sm:$0xff] %v97
    %100 = vst [vmem:[#allocation7 + $0x8] sm:$0xff] %v98
    // Predicated region
    $region26: #{tpu_custom_call.1} parent=1 // pred_check
      _
    $region27: #{tpu_custom_call.1} parent=1 // pred_check_branch
      %102 = sbr.rel (0) target = $region29
    $region28: #{tpu_custom_call.1} parent=1 // pred_region
      %s104 = ssub.s32 256, 256
      %105 = vsyncadd [#allocation4], %s104
      %s106 = sshll.u32 [#allocation7], 4
      %s107 = int_to_ptr.vmem [resolvable:$true] %s106
      %112 = dma.vmem_to_hbm [thread:$0]  %s107, 256, %s4, [#allocation4], 128, 128, 8
    $region29: #{tpu_custom_call.1} parent=1 // pred_fallthru
      _
    // Predicated region
    $region30: #{tpu_custom_call.1} parent=1 // pred_check
      _
    $region31: #{tpu_custom_call.1} parent=1 // pred_check_branch
      %114 = sbr.rel (0) target = $region33
    $region32: #{tpu_custom_call.1} parent=1 // pred_region
      %115 = dma.done [#allocation4], 256
    $region33: #{tpu_custom_call.1} parent=1 // pred_fallthru
      _
    %116 = vsyncpa [#allocation3], 1
    %117 = vsyncpa [#allocation6], 1
    %118 = vsyncpa [#allocation4], 1

</llo_original>
